<compile_context>
chip_gen: v5e
topology: v5e:2x2
jax: 0.10.0
libtpu: 0.0.40
codegen_flags: <defaults>
</compile_context>

<pallas_src>
import functools

import jax
import jax.numpy as jnp
from jax import lax
from jax.experimental import pallas as pl
from jax.experimental.pallas import tpu as pltpu

_LANE = 128
_ROW_ALIGN = 16              # works for f32 (8,128) and bf16 (16,128) tiles
_BLOCK_BYTES_CAP = 4 << 20   # ~4 MiB per input block: 2 inputs x 2 buffers stays
                             # well inside scoped VMEM on v5e/v6e/v7x


def _round_up(x, m):
    return ((x + m - 1) // m) * m


# ----------------------------------------------------------------------------
# Pallas kernels (gridded, accumulator pattern)
# ----------------------------------------------------------------------------
def _cross_entropy_kernel(logits_ref, labels_ref, out_ref, acc_ref, *,
                          batch_size, block_rows, mask_tail):
    """Mean softmax cross-entropy; labels are int32 class ids (no one-hot DMA)."""
    pid = pl.program_id(0)

    @pl.when(pid == 0)
    def _init():
        acc_ref[0] = jnp.float32(0.0)

    x = logits_ref[...].astype(jnp.float32)          # (TB, C), cast on load
    lab = labels_ref[...]                            # (TB, 1) int32
    tb, c = x.shape

    m = jnp.max(x, axis=-1, keepdims=True)
    lse = m + jnp.log(jnp.sum(jnp.exp(x - m), axis=-1, keepdims=True))
    class_ids = lax.broadcasted_iota(jnp.int32, (tb, c), 1)
    true_logit = jnp.sum(jnp.where(class_ids == lab, x, 0.0),
                         axis=-1, keepdims=True)
    per_example = lse - true_logit                   # (TB, 1)

    if mask_tail:
        is_tail = pid == pl.num_programs(0) - 1

        @pl.when(is_tail)
        def _tail():
            row_ids = (pid * block_rows
                       + lax.broadcasted_iota(jnp.int32, (tb, 1), 0))
            valid = row_ids < batch_size
            acc_ref[0] = acc_ref[0] + jnp.sum(
                jnp.where(valid, per_example, 0.0))

        @pl.when(jnp.logical_not(is_tail))
        def _body():
            acc_ref[0] = acc_ref[0] + jnp.sum(per_example)
    else:
        acc_ref[0] = acc_ref[0] + jnp.sum(per_example)

    @pl.when(pid == pl.num_programs(0) - 1)
    def _finalize():
        out_ref[0, 0] = acc_ref[0] / jnp.float32(batch_size)


def _softmax_bce_kernel(logits_ref, labels_ref, out_ref, acc_ref, *,
                        batch_size, num_classes, block_rows, mask_tail):
    """softmax over classes + F.binary_cross_entropy (mean over B*C)."""
    pid = pl.program_id(0)

    @pl.when(pid == 0)
    def _init():
        acc_ref[0] = jnp.float32(0.0)

    x = logits_ref[...].astype(jnp.float32)          # (TB, C)
    y = labels_ref[...].astype(jnp.float32)          # (TB, C)
    tb, c = x.shape

    m = jnp.max(x, axis=-1, keepdims=True)
    e = jnp.exp(x - m)
    p = e * pl.reciprocal(jnp.sum(e, axis=-1, keepdims=True), approx=False)
    # F.binary_cross_entropy clamps the log terms at -100 (PyTorch semantics).
    logp = jnp.maximum(jnp.log(p), -100.0)
    log1mp = jnp.maximum(jnp.log1p(-p), -100.0)
    bc = -(y * logp + (1.0 - y) * log1mp)            # (TB, C)

    if mask_tail:
        is_tail = pid == pl.num_programs(0) - 1

        @pl.when(is_tail)
        def _tail():
            row_ids = (pid * block_rows
                       + lax.broadcasted_iota(jnp.int32, (tb, c), 0))
            valid = row_ids < batch_size
            acc_ref[0] = acc_ref[0] + jnp.sum(jnp.where(valid, bc, 0.0))

        @pl.when(jnp.logical_not(is_tail))
        def _body():
            acc_ref[0] = acc_ref[0] + jnp.sum(bc)
    else:
        acc_ref[0] = acc_ref[0] + jnp.sum(bc)

    @pl.when(pid == pl.num_programs(0) - 1)
    def _finalize():
        out_ref[0, 0] = acc_ref[0] / jnp.float32(batch_size * num_classes)


def _bce_with_logits_kernel(logits_ref, labels_ref, out_ref, acc_ref, *,
                            n_valid, block_elems, mask_tail):
    """F.binary_cross_entropy_with_logits, mean reduction (lane-dense tiles)."""
    pid = pl.program_id(0)

    @pl.when(pid == 0)
    def _init():
        acc_ref[0] = jnp.float32(0.0)

    x = logits_ref[...].astype(jnp.float32)          # (TR, 128)
    y = labels_ref[...].astype(jnp.float32)
    tr, lanes = x.shape

    bc = jnp.maximum(x, 0.0) - x * y + jnp.log1p(jnp.exp(-jnp.abs(x)))

    if mask_tail:
        is_tail = pid == pl.num_programs(0) - 1

        @pl.when(is_tail)
        def _tail():
            idx = (pid * block_elems
                   + lax.broadcasted_iota(jnp.int32, (tr, lanes), 0) * lanes
                   + lax.broadcasted_iota(jnp.int32, (tr, lanes), 1))
            acc_ref[0] = acc_ref[0] + jnp.sum(
                jnp.where(idx < n_valid, bc, 0.0))

        @pl.when(jnp.logical_not(is_tail))
        def _body():
            acc_ref[0] = acc_ref[0] + jnp.sum(bc)
    else:
        acc_ref[0] = acc_ref[0] + jnp.sum(bc)

    @pl.when(pid == pl.num_programs(0) - 1)
    def _finalize():
        out_ref[0, 0] = acc_ref[0] / jnp.float32(n_valid)


def _focal_loss_kernel(logits_ref, labels_ref, out_ref, acc_ref, *,
                       gamma, n_valid, block_elems, mask_tail):
    """focal_loss(logits, labels, alpha=None, gamma) (lane-dense tiles)."""
    pid = pl.program_id(0)

    @pl.when(pid == 0)
    def _init():
        acc_ref[0] = jnp.float32(0.0)
        acc_ref[1] = jnp.float32(0.0)

    x = logits_ref[...].astype(jnp.float32)          # (TR, 128)
    y = labels_ref[...].astype(jnp.float32)
    tr, lanes = x.shape

    s = jnp.log1p(jnp.exp(-jnp.abs(x)))              # softplus(-|x|), shared
    bc = jnp.maximum(x, 0.0) - x * y + s             # stable BCE-with-logits
    if gamma == 0.0:
        loss = bc
    else:
        # modulator = exp(-gamma*(y*x + softplus(-x))); stable form of
        # exp(-gamma*y*x - gamma*log(1+exp(-x))) from the PyTorch reference.
        softplus_neg = s + jnp.maximum(-x, 0.0)      # softplus(-x)
        modulator = jnp.exp(-gamma * (y * x + softplus_neg))
        loss = modulator * bc

    # padded labels are zero, so the label-sum needs no masking
    acc_ref[1] = acc_ref[1] + jnp.sum(y)

    if mask_tail:
        is_tail = pid == pl.num_programs(0) - 1

        @pl.when(is_tail)
        def _tail():
            idx = (pid * block_elems
                   + lax.broadcasted_iota(jnp.int32, (tr, lanes), 0) * lanes
                   + lax.broadcasted_iota(jnp.int32, (tr, lanes), 1))
            acc_ref[0] = acc_ref[0] + jnp.sum(
                jnp.where(idx < n_valid, loss, 0.0))

        @pl.when(jnp.logical_not(is_tail))
        def _body():
            acc_ref[0] = acc_ref[0] + jnp.sum(loss)
    else:
        acc_ref[0] = acc_ref[0] + jnp.sum(loss)

    @pl.when(pid == pl.num_programs(0) - 1)
    def _finalize():
        # NOTE: all-zero labels give inf/NaN, matching the PyTorch reference.
        out_ref[0, 0] = acc_ref[0] / acc_ref[1]


# ----------------------------------------------------------------------------
# pallas_call wrapper (1-D grid, resident SMEM scalar output + accumulator)
# ----------------------------------------------------------------------------
def _scalar_out_call(kernel, inputs, grid, in_specs, cost_estimate=None):
    out = pl.pallas_call(
        kernel,
        out_shape=jax.ShapeDtypeStruct((1, 1), jnp.float32),
        grid_spec=pltpu.PrefetchScalarGridSpec(
            num_scalar_prefetch=0,
            grid=(grid,),
            in_specs=in_specs,
            out_specs=pl.BlockSpec((1, 1), lambda i: (0, 0),
                                   memory_space=pltpu.MemorySpace.SMEM),
            scratch_shapes=[pltpu.SMEM((2,), jnp.float32)],
        ),
        compiler_params=pltpu.CompilerParams(
            dimension_semantics=("arbitrary",)),
        cost_estimate=cost_estimate,
    )(*inputs)
    return out[0, 0]


# ----------------------------------------------------------------------------
# Host-side loss entry points
# ----------------------------------------------------------------------------
def _row_block_prep(logits, max_block_rows, default_cap):
    batch, num_classes = logits.shape
    itemsize = jnp.dtype(logits.dtype).itemsize
    cap = default_cap if max_block_rows is None else max_block_rows
    rows_by_vmem = max(_ROW_ALIGN,
                       (_BLOCK_BYTES_CAP // max(num_classes * itemsize, 1))
                       // _ROW_ALIGN * _ROW_ALIGN)
    block_rows = max(_ROW_ALIGN,
                     min(_round_up(cap, _ROW_ALIGN), rows_by_vmem,
                         _round_up(batch, _ROW_ALIGN)))
    padded_b = _round_up(batch, block_rows)
    return batch, num_classes, itemsize, block_rows, padded_b


def cross_entropy_loss(logits, labels, *, max_block_rows=None):
    batch, num_classes, itemsize, block_rows, padded_b = _row_block_prep(
        logits, max_block_rows, default_cap=512)
    grid = padded_b // block_rows
    pad_rows = padded_b - batch

    # Native-dtype DMA of logits (cast inside kernel); int32 labels instead of
    # a materialized [B, C] fp32 one-hot -> roughly halves HBM traffic.
    logits_p = jnp.pad(logits, ((0, pad_rows), (0, 0))) if pad_rows else logits
    labels_col = labels.astype(jnp.int32).reshape(batch, 1)
    labels_p = (jnp.pad(labels_col, ((0, pad_rows), (0, 0)))
                if pad_rows else labels_col)

    kernel = functools.partial(_cross_entropy_kernel,
                               batch_size=batch, block_rows=block_rows,
                               mask_tail=bool(pad_rows))
    cost = pl.CostEstimate(
        flops=6 * padded_b * num_classes,
        transcendentals=padded_b * num_classes + padded_b,
        bytes_accessed=padded_b * num_classes * itemsize + padded_b * 4 + 4)
    return _scalar_out_call(
        kernel, (logits_p, labels_p), grid,
        in_specs=[pl.BlockSpec((block_rows, num_classes), lambda i: (i, 0)),
                  pl.BlockSpec((block_rows, 1), lambda i: (i, 0))],
        cost_estimate=cost)


def softmax_bce_loss(logits, labels, *, max_block_rows=None):
    batch, num_classes, itemsize, block_rows, padded_b = _row_block_prep(
        logits, max_block_rows, default_cap=512)
    grid = padded_b // block_rows
    pad_rows = padded_b - batch

    logits_p = jnp.pad(logits, ((0, pad_rows), (0, 0))) if pad_rows else logits
    labels_p = jnp.pad(labels, ((0, pad_rows), (0, 0))) if pad_rows else labels

    kernel = functools.partial(_softmax_bce_kernel,
                               batch_size=batch, num_classes=num_classes,
                               block_rows=block_rows, mask_tail=bool(pad_rows))
    cost = pl.CostEstimate(
        flops=10 * padded_b * num_classes,
        transcendentals=3 * padded_b * num_classes,
        bytes_accessed=2 * padded_b * num_classes * itemsize + 4)
    spec = pl.BlockSpec((block_rows, num_classes), lambda i: (i, 0))
    return _scalar_out_call(kernel, (logits_p, labels_p), grid,
                            in_specs=[spec, spec], cost_estimate=cost)


def _lane_dense_prep(logits, labels, max_block_rows):
    """Flatten [B, C] -> (rows, 128) lane-dense layout (global elementwise sum)."""
    n = int(logits.size)
    rows = -(-n // _LANE)
    cap = 2048 if max_block_rows is None else max_block_rows
    block_rows = max(_ROW_ALIGN,
                     min(_round_up(cap, _ROW_ALIGN),
                         _round_up(rows, _ROW_ALIGN)))
    padded_rows = _round_up(rows, block_rows)
    pad = padded_rows * _LANE - n
    x = jnp.pad(logits.reshape(-1), (0, pad)).reshape(padded_rows, _LANE)
    y = jnp.pad(labels.reshape(-1), (0, pad)).reshape(padded_rows, _LANE)
    return x, y, n, block_rows, padded_rows // block_rows, pad


def bce_with_logits_loss(logits, labels, *, max_block_rows=None):
    x, y, n, block_rows, grid, pad = _lane_dense_prep(
        logits, labels, max_block_rows)
    itemsize = (jnp.dtype(logits.dtype).itemsize
                + jnp.dtype(labels.dtype).itemsize)
    elems = grid * block_rows * _LANE
    kernel = functools.partial(_bce_with_logits_kernel,
                               n_valid=n, block_elems=block_rows * _LANE,
                               mask_tail=bool(pad))
    cost = pl.CostEstimate(flops=6 * elems, transcendentals=2 * elems,
                           bytes_accessed=elems * itemsize + 4)
    spec = pl.BlockSpec((block_rows, _LANE), lambda i: (i, 0))
    return _scalar_out_call(kernel, (x, y), grid, in_specs=[spec, spec],
                            cost_estimate=cost)


def focal_loss(logits, labels, *, gamma=2.0, max_block_rows=None):
    x, y, n, block_rows, grid, pad = _lane_dense_prep(
        logits, labels, max_block_rows)
    itemsize = (jnp.dtype(logits.dtype).itemsize
                + jnp.dtype(labels.dtype).itemsize)
    elems = grid * block_rows * _LANE
    kernel = functools.partial(_focal_loss_kernel, gamma=float(gamma),
                               n_valid=n, block_elems=block_rows * _LANE,
                               mask_tail=bool(pad))
    cost = pl.CostEstimate(flops=12 * elems, transcendentals=3 * elems,
                           bytes_accessed=elems * itemsize + 4)
    spec = pl.BlockSpec((block_rows, _LANE), lambda i: (i, 0))
    return _scalar_out_call(kernel, (x, y), grid, in_specs=[spec, spec],
                            cost_estimate=cost)


# ----------------------------------------------------------------------------
# Loss module (JAX / Pallas port of core/solver_new.py::Loss)
# ----------------------------------------------------------------------------
class Loss:
    def __init__(self, loss_type: str = "cross_entropy", beta: float = 0.999,
                 fl_gamma=2, samples_per_class=None, class_balanced=False):
        if class_balanced is True and samples_per_class is None:
            raise ValueError(
                "samples_per_class cannot be None when class_balanced is True")
        self.loss_type = loss_type
        self.beta = beta
        self.fl_gamma = float(fl_gamma)
        self.samples_per_class = samples_per_class
        self.class_balanced = class_balanced

    def __call__(self, logits, labels):
        """
        logits: float array [batch, num_classes]
        labels: int array [batch] for 'cross_entropy';
                float array [batch, num_classes] for the binary/focal/softmax
                paths (mirrors the PyTorch module's `labels_one_hot = labels`).
        """
        if self.class_balanced:
            # TODO(synk): class_balanced re-weighting (weights tensor) not ported.
            raise NotImplementedError("class_balanced weights not ported")

        if self.loss_type == "cross_entropy":
            return cross_entropy_loss(logits, labels)
        elif self.loss_type == "focal_loss":
            return focal_loss(logits, labels, gamma=self.fl_gamma)
        elif self.loss_type == "binary_cross_entropy":
            return bce_with_logits_loss(logits, labels)
        elif self.loss_type == "softmax_binary_cross_entropy":
            return softmax_bce_loss(logits, labels)
        else:
            raise NotImplementedError(self.loss_type)


# ----------------------------------------------------------------------------
# Pure-JAX references for sanity checking
# ----------------------------------------------------------------------------
def _ref_cross_entropy(logits, labels):
    logp = jax.nn.log_softmax(logits.astype(jnp.float32), axis=-1)
    oh = jax.nn.one_hot(labels, logits.shape[1], dtype=jnp.float32)
    return -jnp.mean(jnp.sum(oh * logp, axis=-1))


def _ref_bce(logits, labels):
    x = logits.astype(jnp.float32)
    y = labels.astype(jnp.float32)
    bc = jnp.maximum(x, 0.0) - x * y + jnp.log1p(jnp.exp(-jnp.abs(x)))
    return jnp.mean(bc)


def _ref_focal(logits, labels, gamma=2.0):
    x = logits.astype(jnp.float32)
    y = labels.astype(jnp.float32)
    bc = jnp.maximum(x, 0.0) - x * y + jnp.log1p(jnp.exp(-jnp.abs(x)))
    mod = jnp.exp(-gamma * y * x - gamma * jax.nn.softplus(-x))
    return jnp.sum(mod * bc) / jnp.sum(y)


def _ref_softmax_bce(logits, labels):
    p = jax.nn.softmax(logits.astype(jnp.float32), axis=-1)
    y = labels.astype(jnp.float32)
    logp = jnp.maximum(jnp.log(p), -100.0)
    log1mp = jnp.maximum(jnp.log1p(-p), -100.0)
    return jnp.mean(-(y * logp + (1.0 - y) * log1mp))


if __name__ == "__main__":
    key = jax.random.PRNGKey(0)
    k1, k2, k3, k4 = jax.random.split(key, 4)

    batch, num_classes = 8, 16
    logits = jax.random.normal(k1, (batch, num_classes), dtype=jnp.float32)
    labels_int = jax.random.randint(k2, (batch,), 0, num_classes, dtype=jnp.int32)
    labels_onehot = jax.nn.one_hot(labels_int, num_classes, dtype=jnp.float32)

    ce = Loss()(logits, labels_int)
    jax.block_until_ready(ce)
    assert jnp.allclose(ce, _ref_cross_entropy(logits, labels_int),
                        atol=1e-5, rtol=1e-5)

    fl = Loss(loss_type="focal_loss", fl_gamma=2)(logits, labels_onehot)
    jax.block_until_ready(fl)
    assert jnp.allclose(fl, _ref_focal(logits, labels_onehot, 2.0),
                        atol=1e-5, rtol=1e-5)

    bce = Loss(loss_type="binary_cross_entropy")(logits, labels_onehot)
    jax.block_until_ready(bce)
    assert jnp.allclose(bce, _ref_bce(logits, labels_onehot),
                        atol=1e-5, rtol=1e-5)

    sbce = Loss(loss_type="softmax_binary_cross_entropy")(logits, labels_onehot)
    jax.block_until_ready(sbce)
    assert jnp.allclose(sbce, _ref_softmax_bce(logits, labels_onehot),
                        atol=1e-5, rtol=1e-5)

    # exercise the multi-block (grid > 1) accumulator + tail-masking path
    b2, c2 = 40, 64
    lg2 = jax.random.normal(k3, (b2, c2), dtype=jnp.float32)
    li2 = jax.random.randint(k4, (b2,), 0, c2, dtype=jnp.int32)
    lo2 = jax.nn.one_hot(li2, c2, dtype=jnp.float32)

    ce2 = cross_entropy_loss(lg2, li2, max_block_rows=16)
    jax.block_until_ready(ce2)
    assert jnp.allclose(ce2, _ref_cross_entropy(lg2, li2), atol=1e-5, rtol=1e-5)

    fl2 = focal_loss(lg2, lo2, gamma=2.0, max_block_rows=16)
    jax.block_until_ready(fl2)
    assert jnp.allclose(fl2, _ref_focal(lg2, lo2, 2.0), atol=1e-5, rtol=1e-5)

    bce2 = bce_with_logits_loss(lg2, lo2, max_block_rows=16)
    jax.block_until_ready(bce2)
    assert jnp.allclose(bce2, _ref_bce(lg2, lo2), atol=1e-5, rtol=1e-5)

    sbce2 = softmax_bce_loss(lg2, lo2, max_block_rows=16)
    jax.block_until_ready(sbce2)
    assert jnp.allclose(sbce2, _ref_softmax_bce(lg2, lo2), atol=1e-5, rtol=1e-5)

    print("KERNEL_OK")
</pallas_src>

<mosaic_0001>
module attributes {stable_mosaic.version = 11 : i64} {
  func.func @_cross_entropy_kernel(%arg0: i32, %arg1: memref<16x16xf32, #tpu.memory_space<vmem>>, %arg2: memref<16x1xi32, #tpu.memory_space<vmem>>, %arg3: memref<1x1xf32, #tpu.memory_space<smem>>, %arg4: memref<2xf32, #tpu.memory_space<smem>>) attributes {dimension_semantics = [#tpu.dimension_semantics<arbitrary>], iteration_bounds = array<i64: 1>, scalar_prefetch = 0 : i64, scratch_operands = 1 : i64, tpu.core_type = #tpu.core_type<tc>, window_params = [{transform_indices = @transform_0, window_bounds = array<i64: 16, 16>}, {transform_indices = @transform_1, window_bounds = array<i64: 16, 1>}, {transform_indices = @transform_2, window_bounds = array<i64: 1, 1>}]} {
    %c0_i32 = arith.constant 0 : i32
    %0 = arith.cmpi eq, %arg0, %c0_i32 : i32
    %1 = arith.extui %0 : i1 to i32
    %c0_i32_0 = arith.constant 0 : i32
    %2 = arith.cmpi ne, %1, %c0_i32_0 : i32
    scf.if %2 {
      %cst_12 = arith.constant 0.000000e+00 : f32
      %c0_13 = arith.constant 0 : index
      %31 = memref.load %arg4[%c0_13] : memref<2xf32, #tpu.memory_space<smem>>
      memref.store %cst_12, %arg4[%c0_13] : memref<2xf32, #tpu.memory_space<smem>>
    } else {
    }
    %c0 = arith.constant 0 : index
    %c0_1 = arith.constant 0 : index
    %3 = vector.load %arg1[%c0, %c0_1] : memref<16x16xf32, #tpu.memory_space<vmem>>, vector<16x16xf32>
    %c0_2 = arith.constant 0 : index
    %c0_3 = arith.constant 0 : index
    %4 = vector.load %arg2[%c0_2, %c0_3] : memref<16x1xi32, #tpu.memory_space<vmem>>, vector<16x1xi32>
    %cst = arith.constant dense<0xFF800000> : vector<16xf32>
    %5 = vector.multi_reduction <maximumf>, %3, %cst [1] : vector<16x16xf32> to vector<16xf32>
    %6 = vector.shape_cast %5 : vector<16xf32> to vector<16x1xf32>
    %7 = vector.broadcast %6 : vector<16x1xf32> to vector<16x16xf32>
    %8 = arith.subf %3, %7 : vector<16x16xf32>
    %9 = math.exp %8 : vector<16x16xf32>
    %cst_4 = arith.constant dense<0.000000e+00> : vector<16xf32>
    %10 = vector.multi_reduction <add>, %9, %cst_4 [1] : vector<16x16xf32> to vector<16xf32>
    %11 = vector.shape_cast %10 : vector<16xf32> to vector<16x1xf32>
    %12 = math.log %11 : vector<16x1xf32>
    %13 = arith.addf %6, %12 : vector<16x1xf32>
    %14 = tpu.iota {dimensions = array<i32: 1>} : vector<16x16xi32>
    %15 = vector.broadcast %4 : vector<16x1xi32> to vector<16x16xi32>
    %16 = arith.cmpi eq, %14, %15 : vector<16x16xi32>
    %cst_5 = arith.constant 0.000000e+00 : f32
    %17 = vector.broadcast %cst_5 : f32 to vector<16x16xf32>
    %18 = arith.select %16, %3, %17 : vector<16x16xi1>, vector<16x16xf32>
    %cst_6 = arith.constant dense<0.000000e+00> : vector<16xf32>
    %19 = vector.multi_reduction <add>, %18, %cst_6 [1] : vector<16x16xf32> to vector<16xf32>
    %20 = vector.shape_cast %19 : vector<16xf32> to vector<16x1xf32>
    %21 = arith.subf %13, %20 : vector<16x1xf32>
    %c0_i32_7 = arith.constant 0 : i32
    %22 = arith.cmpi eq, %arg0, %c0_i32_7 : i32
    %23 = arith.extui %22 : i1 to i32
    %c0_i32_8 = arith.constant 0 : i32
    %24 = arith.cmpi ne, %23, %c0_i32_8 : i32
    scf.if %24 {
      %c16_i32 = arith.constant 16 : i32
      %31 = arith.muli %arg0, %c16_i32 : i32
      %32 = tpu.iota {dimensions = array<i32: 0>} : vector<16x1xi32>
      %33 = vector.broadcast %31 : i32 to vector<16x1xi32>
      %34 = arith.addi %33, %32 : vector<16x1xi32>
      %c8_i32 = arith.constant 8 : i32
      %35 = vector.broadcast %c8_i32 : i32 to vector<16x1xi32>
      %36 = arith.cmpi slt, %34, %35 : vector<16x1xi32>
      %c0_12 = arith.constant 0 : index
      %37 = memref.load %arg4[%c0_12] : memref<2xf32, #tpu.memory_space<smem>>
      %cst_13 = arith.constant 0.000000e+00 : f32
      %38 = vector.broadcast %cst_13 : f32 to vector<16x1xf32>
      %39 = arith.select %36, %21, %38 : vector<16x1xi1>, vector<16x1xf32>
      %40 = vector.shape_cast %39 : vector<16x1xf32> to vector<1x16x1xf32>
      %cst_14 = arith.constant dense<0.000000e+00> : vector<1xf32>
      %41 = vector.multi_reduction <add>, %40, %cst_14 [1, 2] : vector<1x16x1xf32> to vector<1xf32>
      %42 = vector.shape_cast %41 : vector<1xf32> to vector<1x1x1xf32>
      %43 = vector.extract %42[0, 0, 0] : f32 from vector<1x1x1xf32>
      %44 = arith.addf %37, %43 : f32
      %c0_15 = arith.constant 0 : index
      %45 = memref.load %arg4[%c0_15] : memref<2xf32, #tpu.memory_space<smem>>
      memref.store %44, %arg4[%c0_15] : memref<2xf32, #tpu.memory_space<smem>>
    } else {
    }
    %true = arith.constant true
    %25 = arith.xori %22, %true : i1
    %26 = arith.extui %25 : i1 to i32
    %c0_i32_9 = arith.constant 0 : i32
    %27 = arith.cmpi ne, %26, %c0_i32_9 : i32
    scf.if %27 {
      %c0_12 = arith.constant 0 : index
      %31 = memref.load %arg4[%c0_12] : memref<2xf32, #tpu.memory_space<smem>>
      %32 = vector.shape_cast %21 : vector<16x1xf32> to vector<1x16x1xf32>
      %cst_13 = arith.constant dense<0.000000e+00> : vector<1xf32>
      %33 = vector.multi_reduction <add>, %32, %cst_13 [1, 2] : vector<1x16x1xf32> to vector<1xf32>
      %34 = vector.shape_cast %33 : vector<1xf32> to vector<1x1x1xf32>
      %35 = vector.extract %34[0, 0, 0] : f32 from vector<1x1x1xf32>
      %36 = arith.addf %31, %35 : f32
      %c0_14 = arith.constant 0 : index
      %37 = memref.load %arg4[%c0_14] : memref<2xf32, #tpu.memory_space<smem>>
      memref.store %36, %arg4[%c0_14] : memref<2xf32, #tpu.memory_space<smem>>
    } else {
    }
    %c0_i32_10 = arith.constant 0 : i32
    %28 = arith.cmpi eq, %arg0, %c0_i32_10 : i32
    %29 = arith.extui %28 : i1 to i32
    %c0_i32_11 = arith.constant 0 : i32
    %30 = arith.cmpi ne, %29, %c0_i32_11 : i32
    scf.if %30 {
      %c0_12 = arith.constant 0 : index
      %31 = memref.load %arg4[%c0_12] : memref<2xf32, #tpu.memory_space<smem>>
      %cst_13 = arith.constant 8.000000e+00 : f32
      %32 = arith.divf %31, %cst_13 : f32
      %c0_14 = arith.constant 0 : index
      %c0_15 = arith.constant 0 : index
      %33 = memref.load %arg3[%c0_14, %c0_15] : memref<1x1xf32, #tpu.memory_space<smem>>
      memref.store %32, %arg3[%c0_14, %c0_15] : memref<1x1xf32, #tpu.memory_space<smem>>
    } else {
    }
    return
  }
  func.func @transform_0(%arg0: i32) -> (i32, i32) {
    %c0_i32 = arith.constant 0 : i32
    %c0_i32_0 = arith.constant 0 : i32
    return %arg0, %c0_i32 : i32, i32
  }
  func.func @transform_1(%arg0: i32) -> (i32, i32) {
    %c0_i32 = arith.constant 0 : i32
    %c0_i32_0 = arith.constant 0 : i32
    return %arg0, %c0_i32 : i32, i32
  }
  func.func @transform_2(%arg0: i32) -> (i32, i32) {
    %c0_i32 = arith.constant 0 : i32
    %c0_i32_0 = arith.constant 0 : i32
    %c0_i32_1 = arith.constant 0 : i32
    return %c0_i32, %c0_i32_0 : i32, i32
  }
}

</mosaic_0001>

<llo_original>
// kernel: tpu_custom_call.1
$region0: #{tpu_custom_call.1}
  #allocation0 [shape = 'u32[]', space=smem, size = 0x4, offset = 0x4, fixed_abs, tag = 'smem constant byte address 0x4 - core index']
  #allocation1 [shape = 'u32[72,128]{1,0:T(1,128)}', space=vmem, size = 0x9000, scoped, tag = 'internal scratch']
  #allocation2 [shape = 'f32[2]{0:T(128)}', space=smem, size = 0x200, scoped, tag = 'scratch operand']
  %s0 = inlined_call_operand.vmem [shape: f32[16,16], index: 0, kind: input, shape index: {}]
  %s1 = inlined_call_operand.vmem [shape: s32[16,1], index: 1, kind: input, shape index: {}]
  %s2 = inlined_call_operand.hbm [shape: f32[1,1], index: 2, kind: output, shape index: {}]
  %s3 = sld [smem:[#allocation0]]
  $region34: #{tpu_custom_call.1} parent=0
    _
  %s5 = ssub.s32 1, %s3
  %s6 = scalar_select 0, %s5, %s3
  $region1: #{tpu_custom_call.1} parent=0
    #allocation3 [shape = 'u8[512]{0}', space=smem, size = 0x200, scoped, tag = 'output window, operand 0, single buffered']
    #allocation4 [shape = 's32[1]{0}', space=sflag, size = 0x4, scoped, tag = 'scoped memory for tpu_custom_call.1']
    %7 = vsyncpa [#allocation4], 0
    // Predicated region
    $region2: #{tpu_custom_call.1} parent=1 // pred_check
      _
    $region3: #{tpu_custom_call.1} parent=1 // pred_check_branch
      %9 = sbr.rel (0) target = $region5
    $region4: #{tpu_custom_call.1} parent=1 // pred_region
      _
    $region5: #{tpu_custom_call.1} parent=1 // pred_fallthru
      _
    // Predicated region
    $region6: #{tpu_custom_call.1} parent=1 // pred_check
      _
    $region7: #{tpu_custom_call.1} parent=1 // pred_check_branch
      %11 = sbr.rel (0) target = $region9
    $region8: #{tpu_custom_call.1} parent=1 // pred_region
      _
    $region9: #{tpu_custom_call.1} parent=1 // pred_fallthru
      _
    %p12 = scmp.eq.s32.totalorder 0, 0
    // Predicated region
    $region10: #{tpu_custom_call.1} parent=1 // pred_check
      %p13 = pneg %p12
    $region11: #{tpu_custom_call.1} parent=1 // pred_check_branch
      %15 = sbr.rel (%p13) target = $region13
    $region12: #{tpu_custom_call.1} parent=1 // pred_region
      %s16 = scalar_lea.smem [#allocation2], 0
      %17 = sst [smem:[%s16]] 0.0
    $region13: #{tpu_custom_call.1} parent=1 // pred_fallthru
      _
    %v18 = vld [vmem:[%s0] sm:$0xff]
    %v19 = vld [vmem:[%s0 + $0x8] sm:$0xff]
    %v20 = vld [vmem:[%s1] sm:$0xff]
    %v21 = vld [vmem:[%s1 + $0x8] sm:$0xff]
    %vm22 = vcmask 130048
    %v23 = vsel %vm22, %v18, -inf
    %24 = vmax.xlane.f32.xlu0 %v23
    %v25 = vpop.xlane.xlu0 %24
    %v26 = vsel %vm22, %v19, -inf
    %27 = vmax.xlane.f32.xlu0 %v26
    %v28 = vpop.xlane.xlu0 %27
    %v29 = vsub.f32 %v18, %v25
    %v30 = vsub.f32 %v19, %v28
    %v31 = vmul.f32 %v29, 1.442695
    %v32 = vpow.pop %v31
    %v33 = vmul.f32 %v30, 1.442695
    %v34 = vpow.pop %v33
    %v35 = vsel %vm22, %v32, 0.0
    %36 = vadd.xlane.f32.xlu0 %v35
    %v37 = vpop.xlane.xlu0 %36
    %v38 = vsel %vm22, %v34, 0.0
    %39 = vadd.xlane.f32.xlu0 %v38
    %v40 = vpop.xlane.xlu0 %39
    %v41 = vlog2.pop %v37
    %v42 = vmul.f32 %v41, 0.6931472
    %v43 = vlog2.pop %v40
    %v44 = vmul.f32 %v43, 0.6931472
    %v45 = vadd.f32 %v25, %v42
    %v46 = vadd.f32 %v28, %v44
    %v47 = vlaneseq
    %v48 = vand.u32 %v47, 127
    %49 = vset.pattern.permute.xlu0 0
    %50 = vperm.xlu0 %49, %v20
    %v51 = vpop.permute.xlu0 %50
    %52 = vset.pattern.permute.xlu0 0
    %53 = vperm.xlu0 %52, %v21
    %v54 = vpop.permute.xlu0 %53
    %vm55 = vcmp.eq.s32.totalorder %v48, %v51
    %vm56 = vcmp.eq.s32.totalorder %v48, %v54
    %v57 = vsel %vm55, %v18, 0.0
    %v58 = vsel %vm56, %v19, 0.0
    %v59 = vsel %vm22, %v57, 0.0
    %60 = vadd.xlane.f32.xlu0 %v59
    %v61 = vpop.xlane.xlu0 %60
    %v62 = vsel %vm22, %v58, 0.0
    %63 = vadd.xlane.f32.xlu0 %v62
    %v64 = vpop.xlane.xlu0 %63
    %v65 = vsub.f32 %v45, %v61
    %v66 = vsub.f32 %v46, %v64
    // Predicated region
    $region14: #{tpu_custom_call.1} parent=1 // pred_check
      %p67 = pneg %p12
    $region15: #{tpu_custom_call.1} parent=1 // pred_check_branch
      %69 = sbr.rel (%p67) target = $region17
    $region16: #{tpu_custom_call.1} parent=1 // pred_region
      %s70 = smul.u32 0, 16
      %v71 = vlaneseq
      %v72 = vshrl.u32 %v71, 7
      %v73 = vadd.s32 %v72, 8
      %v74 = vstv %s70
      %v75 = vadd.s32 %v74, %v72
      %v76 = vadd.s32 %v74, %v73
      %vm77 = vcmp.lt.s32.totalorder %v75, 8
      %vm78 = vcmp.lt.s32.totalorder %v76, 8
      %s79 = sld [smem:[#allocation2]]
      %v80 = vsel %vm77, %v65, 0.0
      %v81 = vsel %vm78, %v66, 0.0
      %vm82 = vcmask 7168
      %v83 = vsel %vm82, %v80, 0.0
      %v84 = vsel %vm82, %v81, 0.0
      %v85 = vadd.f32 %v83, %v84
      %86 = vadd.xlane.f32.xlu0 %v85
      %v87 = vpop.xlane.xlu0 %86
      %v88 = vrot.slane %v87, 4
      %v89 = vadd.f32 %v87, %v88
      %v90 = vrot.slane %v89, 2
      %v91 = vadd.f32 %v89, %v90
      %v92 = vrot.slane %v91, 1
      %v93 = vadd.f32 %v91, %v92
      %s94 = vtos %v93
      %s95 = sadd.f32 %s79, %s94
      %s96 = scalar_lea.smem [#allocation2], 0
      %97 = sst [smem:[%s96]] %s95
    $region17: #{tpu_custom_call.1} parent=1 // pred_fallthru
      _
    %p98 = scmp.ne.s32.totalorder 0, 0
    // Predicated region
    $region18: #{tpu_custom_call.1} parent=1 // pred_check
      %p99 = pneg %p98
    $region19: #{tpu_custom_call.1} parent=1 // pred_check_branch
      %101 = sbr.rel (%p99) target = $region21
    $region20: #{tpu_custom_call.1} parent=1 // pred_region
      %s102 = sld [smem:[#allocation2]]
      %vm103 = vcmask 7168
      %v104 = vsel %vm103, %v65, 0.0
      %v105 = vsel %vm103, %v66, 0.0
      %v106 = vadd.f32 %v104, %v105
      %107 = vadd.xlane.f32.xlu0 %v106
      %v108 = vpop.xlane.xlu0 %107
      %v109 = vrot.slane %v108, 4
      %v110 = vadd.f32 %v108, %v109
      %v111 = vrot.slane %v110, 2
      %v112 = vadd.f32 %v110, %v111
      %v113 = vrot.slane %v112, 1
      %v114 = vadd.f32 %v112, %v113
      %s115 = vtos %v114
      %s116 = sadd.f32 %s102, %s115
      %s117 = scalar_lea.smem [#allocation2], 0
      %118 = sst [smem:[%s117]] %s116
    $region21: #{tpu_custom_call.1} parent=1 // pred_fallthru
      _
    // Predicated region
    $region22: #{tpu_custom_call.1} parent=1 // pred_check
      %p119 = pneg %p12
    $region23: #{tpu_custom_call.1} parent=1 // pred_check_branch
      %121 = sbr.rel (%p119) target = $region25
    $region24: #{tpu_custom_call.1} parent=1 // pred_region
      %s122 = sld [smem:[#allocation2]]
      %v123 = vrcp.pop 8.0
      %v124 = vmul.f32 8.0, %v123
      %v125 = vsub.f32 1.0, %v124
      %v126 = vmul.f32 %v123, %v125
      %v127 = vadd.f32 %v123, %v126
      %vm128 = vweird.f32 %v123
      %v129 = vsel %vm128, %v123, %v127
      %s130 = vtos %v129
      %s131 = smul.f32 %s122, %s130
      %s132 = scalar_lea.smem [#allocation3], 0
      %133 = sst [smem:[%s132]] %s131
    $region25: #{tpu_custom_call.1} parent=1 // pred_fallthru
      _
    // Predicated region
    $region26: #{tpu_custom_call.1} parent=1 // pred_check
      _
    $region27: #{tpu_custom_call.1} parent=1 // pred_check_branch
      %135 = sbr.rel (0) target = $region29
    $region28: #{tpu_custom_call.1} parent=1 // pred_region
      %137 = vsyncadd [#allocation4], 0
      %s139 = sshll.u32 %s2, 4
      %s140 = int_to_ptr.hbm [resolvable:$true] %s139
      %142 = dma.smem_to_hbm [#allocation3], 16, %s140, [#allocation4]
    $region29: #{tpu_custom_call.1} parent=1 // pred_fallthru
      _
    // Predicated region
    $region30: #{tpu_custom_call.1} parent=1 // pred_check
      _
    $region31: #{tpu_custom_call.1} parent=1 // pred_check_branch
      %144 = sbr.rel (0) target = $region33
    $region32: #{tpu_custom_call.1} parent=1 // pred_region
      %146 = dma.done [#allocation4], 16
    $region33: #{tpu_custom_call.1} parent=1 // pred_fallthru
      _
    %147 = sfence
    %148 = vsyncpa [#allocation4], 1

</llo_original>
